<compile_context>
chip_gen: v6e
topology: v6e:2x2x1
jax: 0.10.0
libtpu: 0.0.40
codegen_flags: <defaults>
</compile_context>

<pallas_src>
from functools import partial

import numpy as np
import jax
import jax.numpy as jnp
from jax import lax
from jax.experimental import pallas as pl
from jax.experimental.pallas import tpu as pltpu


# ----------------------------- Pallas kernel ------------------------------- #
def gpsa_kernel(x_ref, wqkv_ref, wo_ref, bo_ref, mask_ref, pos_ref, oms_ref,
                o_ref, *, num_heads):
    # x_ref:    (1, N, C)  f32 VMEM
    # wqkv_ref: (C, 3C)    bf16 VMEM  (q-part already scaled by head_dim**-0.5)
    # wo_ref:   (C, C)     bf16 VMEM
    # bo_ref:   (1, C)     f32 VMEM
    # mask_ref: (H, C)     f32 VMEM   head-column selector (1 where column belongs to head)
    # pos_ref:  (H*N, N)   f32 VMEM   sigmoid(gate) * softmax(pos_logits), stacked head-major
    # oms_ref:  (H*N, 1)   f32 VMEM   (1 - sigmoid(gate)) repeated per query row
    # o_ref:    (1, N, C)  f32 VMEM
    x = x_ref[0]                                                      # (N, C)
    N, C = x.shape
    HN = num_heads * N

    # Fused q/k/v projection: one MXU matmul, bf16 operands, f32 accumulation.
    qkv = jnp.dot(x.astype(jnp.bfloat16), wqkv_ref[...],
                  preferred_element_type=jnp.float32)                 # (N, 3C) f32
    q = qkv[:, :C]                                                    # scale folded into weight
    k = qkv[:, C:2 * C]
    v = qkv[:, 2 * C:]

    mask = mask_ref[...]                                              # (H, C) f32

    # Stacked per-head scores with a single matmul: row (h*N + n) holds q_n masked to
    # head h's columns, so contracting with k over C gives per-head q_h @ k_h^T stacked
    # on rows.  dot_general contracts the last dim of both -> no explicit k transpose.
    qm = (q[None, :, :] * mask[:, None, :]).reshape(HN, C)            # (H*N, C) f32
    s = lax.dot_general(qm.astype(jnp.bfloat16), k.astype(jnp.bfloat16),
                        (((1,), (1,)), ((), ())),
                        preferred_element_type=jnp.float32)           # (H*N, N) f32

    # Stable softmax numerator / denominator for the patch scores (all heads at once).
    s = s - jnp.max(s, axis=-1, keepdims=True)
    e = jnp.exp(s)                                                    # EUP
    se = jnp.sum(e, axis=-1, keepdims=True)                           # XLU row-reduce

    # torch:  attn = (1-sig)*softmax(s) + sig*softmax(pos);  attn /= attn.sum(-1)
    # Algebraically identical with a single normalization:
    #   attn = (oms*e + pos_gated*se) / row_sum(oms*e + pos_gated*se)
    un = oms_ref[...] * e + pos_ref[...] * se                         # (H*N, N) f32
    attn = un * pl.reciprocal(jnp.sum(un, axis=-1, keepdims=True), approx=True)

    # attn @ v for all heads as one matmul; head-mask + sum rebuilds the (N, C) output
    # (equivalent to the per-head concat, without lane-dim slicing/concat).
    ys = jnp.dot(attn.astype(jnp.bfloat16), v.astype(jnp.bfloat16),
                 preferred_element_type=jnp.float32)                  # (H*N, C)
    y = jnp.sum(ys.reshape(num_heads, N, C) * mask[:, None, :], axis=0)  # (N, C) f32

    out = jnp.dot(y.astype(jnp.bfloat16), wo_ref[...],
                  preferred_element_type=jnp.float32) + bo_ref[...]
    o_ref[0] = out.astype(o_ref.dtype)


# ------------------------------ JAX glue ----------------------------------- #
def make_rel_indices(H, W):
    """Reproduces GPSA.get_rel_indices -> (N, N, 3) with [dx, dy, d^2]."""
    ax_w = jnp.arange(W)
    indx = ax_w[None, :] - ax_w[:, None]                       # (W, W)
    indx = jnp.tile(indx, (H, H))                              # (N, N)
    ax_h = jnp.arange(H)
    indy = ax_h[None, :] - ax_h[:, None]                       # (H, H)
    indy = jnp.repeat(jnp.repeat(indy, W, axis=0), W, axis=1)  # (N, N)
    indd = indx ** 2 + indy ** 2
    return jnp.stack([indx, indy, indd], axis=-1).astype(jnp.float32)


def init_gpsa_params(key, dim, num_heads, locality_strength=1.0):
    k_q, k_k, k_o, k_pos = jax.random.split(key, 4)
    std = 0.02
    # torch Linear weight is (out, in); store transposed (in, out) for x @ W.
    wq_t = (jax.random.normal(k_q, (dim, dim), jnp.float32) * std).T
    wk_t = (jax.random.normal(k_k, (dim, dim), jnp.float32) * std).T
    wv_t = jnp.eye(dim, dtype=jnp.float32)                     # local_init: v = I
    wo_t = (jax.random.normal(k_o, (dim, dim), jnp.float32) * std).T
    bo = jnp.zeros((dim,), jnp.float32)

    # pos_proj: Linear(3, num_heads) with local_init on first kernel_size^2 heads.
    # np.array(...) makes a writable host copy (np.asarray of a jax array is read-only).
    pos_w = np.array(jax.random.normal(k_pos, (num_heads, 3), jnp.float32)) * std
    kernel_size = int(num_heads ** 0.5)
    center = (kernel_size - 1) / 2 if kernel_size % 2 == 0 else kernel_size // 2
    for h1 in range(kernel_size):
        for h2 in range(kernel_size):
            position = h1 + kernel_size * h2
            pos_w[position, 2] = -1.0
            pos_w[position, 1] = 2.0 * (h1 - center)
            pos_w[position, 0] = 2.0 * (h2 - center)
    pos_w = jnp.asarray(pos_w) * locality_strength
    pos_b = jnp.zeros((num_heads,), jnp.float32)

    gating = jnp.ones((num_heads,), jnp.float32)
    return dict(wq_t=wq_t, wk_t=wk_t, wv_t=wv_t, wo_t=wo_t, bo=bo,
                pos_w=pos_w, pos_b=pos_b, gating=gating)


def gpsa_forward(x, params, *, num_heads, grid_hw):
    B, N, C = x.shape
    hd = C // num_heads
    scale = hd ** -0.5
    HN = num_heads * N

    # --- batch-independent precompute (hoisted out of the kernel) ---------- #
    rel = make_rel_indices(*grid_hw)                                        # (N, N, 3)
    pos_logits = jnp.einsum('nmk,hk->hnm', rel, params['pos_w']) + \
        params['pos_b'][:, None, None]                                      # (H, N, N)
    sig = jax.nn.sigmoid(params['gating'])                                  # (H,)
    pos_gated = (sig[:, None, None] *
                 jax.nn.softmax(pos_logits, axis=-1)).reshape(HN, N)        # (H*N, N)
    oms = jnp.repeat(1.0 - sig, N)[:, None]                                 # (H*N, 1)

    # Head-column selector mask (f32 so elementwise math stays f32 on v5e).
    head_mask = (jnp.arange(C)[None, :] // hd ==
                 jnp.arange(num_heads)[:, None]).astype(jnp.float32)        # (H, C)

    # Fused qkv weight, attention scale baked into the q part, bf16 MXU operands.
    wqkv = jnp.concatenate(
        [params['wq_t'] * scale, params['wk_t'], params['wv_t']],
        axis=1).astype(jnp.bfloat16)                                        # (C, 3C)
    wo = params['wo_t'].astype(jnp.bfloat16)                                # (C, C)
    bo = params['bo'].reshape(1, C)                                         # (1, C) f32

    kern = partial(gpsa_kernel, num_heads=num_heads)
    return pl.pallas_call(
        kern,
        out_shape=jax.ShapeDtypeStruct((B, N, C), x.dtype),
        grid=(B,),
        in_specs=[
            pl.BlockSpec((1, N, C), lambda b: (b, 0, 0)),        # x
            pl.BlockSpec((C, 3 * C), lambda b: (0, 0)),          # fused wqkv
            pl.BlockSpec((C, C), lambda b: (0, 0)),              # wo
            pl.BlockSpec((1, C), lambda b: (0, 0)),              # bo
            pl.BlockSpec((num_heads, C), lambda b: (0, 0)),      # head mask
            pl.BlockSpec((HN, N), lambda b: (0, 0)),             # gated pos softmax
            pl.BlockSpec((HN, 1), lambda b: (0, 0)),             # 1 - sigmoid(gate)
        ],
        out_specs=pl.BlockSpec((1, N, C), lambda b: (b, 0, 0)),
        compiler_params=pltpu.CompilerParams(
            dimension_semantics=("parallel",)),                  # v7x: one batch per TC
    )(x, wqkv, wo, bo, head_mask, pos_gated, oms)


# ------------------------- pure-JAX reference ------------------------------ #
def gpsa_reference(x, params, *, num_heads, grid_hw):
    B, N, C = x.shape
    hd = C // num_heads
    scale = hd ** -0.5
    q = (x @ params['wq_t']).reshape(B, N, num_heads, hd).transpose(0, 2, 1, 3)
    k = (x @ params['wk_t']).reshape(B, N, num_heads, hd).transpose(0, 2, 1, 3)
    v = (x @ params['wv_t']).reshape(B, N, num_heads, hd).transpose(0, 2, 1, 3)
    rel = make_rel_indices(*grid_hw)
    pos = jnp.einsum('nmk,hk->hnm', rel, params['pos_w']) + \
        params['pos_b'][:, None, None]
    pos = jax.nn.softmax(pos, axis=-1)[None]                    # (1,H,N,N)
    patch = jnp.einsum('bhnd,bhmd->bhnm', q, k) * scale
    patch = jax.nn.softmax(patch, axis=-1)
    sig = jax.nn.sigmoid(params['gating']).reshape(1, num_heads, 1, 1)
    attn = (1.0 - sig) * patch + sig * pos
    attn = attn / attn.sum(-1, keepdims=True)
    out = jnp.einsum('bhnm,bhmd->bhnd', attn, v)
    out = out.transpose(0, 2, 1, 3).reshape(B, N, C)
    return out @ params['wo_t'] + params['bo']


# --------------------------------- main ------------------------------------ #
if __name__ == "__main__":
    B, dim, num_heads = 2, 32, 8
    grid_hw = (4, 4)                 # H, W  -> N = 16
    N = grid_hw[0] * grid_hw[1]

    key = jax.random.PRNGKey(0)
    k_x, k_p = jax.random.split(key)
    x = jax.random.normal(k_x, (B, N, dim), jnp.float32)
    params = init_gpsa_params(k_p, dim, num_heads, locality_strength=1.0)

    out = gpsa_forward(x, params, num_heads=num_heads, grid_hw=grid_hw)
    out = jax.block_until_ready(out)

    ref = jax.block_until_ready(
        gpsa_reference(x, params, num_heads=num_heads, grid_hw=grid_hw))
    max_err = float(jnp.max(jnp.abs(out - ref)))
    assert out.shape == (B, N, dim)
    assert max_err < 2e-2, f"mismatch vs reference: {max_err}"

    # TODO(synk): attn_drop / proj_drop are identity at p=0.0 and are omitted.
    print("KERNEL_OK")
</pallas_src>

<mosaic_0001>
module attributes {stable_mosaic.version = 11 : i64} {
  func.func @gpsa_kernel(%arg0: i32, %arg1: memref<1x16x32xf32, #tpu.memory_space<vmem>>, %arg2: memref<32x96xbf16, #tpu.memory_space<vmem>>, %arg3: memref<32x32xbf16, #tpu.memory_space<vmem>>, %arg4: memref<1x32xf32, #tpu.memory_space<vmem>>, %arg5: memref<8x32xf32, #tpu.memory_space<vmem>>, %arg6: memref<128x16xf32, #tpu.memory_space<vmem>>, %arg7: memref<128x1xf32, #tpu.memory_space<vmem>>, %arg8: memref<1x16x32xf32, #tpu.memory_space<vmem>>) attributes {dimension_semantics = [#tpu.dimension_semantics<parallel>], iteration_bounds = array<i64: 2>, scalar_prefetch = 0 : i64, scratch_operands = 0 : i64, tpu.core_type = #tpu.core_type<tc>, window_params = [{transform_indices = @transform_0, window_bounds = array<i64: 1, 16, 32>}, {pipeline_mode = #tpu.pipeline_mode<synchronous>, transform_indices = @transform_1, window_bounds = array<i64: 32, 96>}, {pipeline_mode = #tpu.pipeline_mode<synchronous>, transform_indices = @transform_2, window_bounds = array<i64: 32, 32>}, {pipeline_mode = #tpu.pipeline_mode<synchronous>, transform_indices = @transform_3, window_bounds = array<i64: 1, 32>}, {pipeline_mode = #tpu.pipeline_mode<synchronous>, transform_indices = @transform_4, window_bounds = array<i64: 8, 32>}, {pipeline_mode = #tpu.pipeline_mode<synchronous>, transform_indices = @transform_5, window_bounds = array<i64: 128, 16>}, {pipeline_mode = #tpu.pipeline_mode<synchronous>, transform_indices = @transform_6, window_bounds = array<i64: 128, 1>}, {transform_indices = @transform_7, window_bounds = array<i64: 1, 16, 32>}]} {
    %c0 = arith.constant 0 : index
    %c0_0 = arith.constant 0 : index
    %c0_1 = arith.constant 0 : index
    %0 = vector.load %arg1[%c0, %c0_0, %c0_1] : memref<1x16x32xf32, #tpu.memory_space<vmem>>, vector<1x16x32xf32>
    %1 = vector.shape_cast %0 : vector<1x16x32xf32> to vector<16x32xf32>
    %2 = arith.truncf %1 : vector<16x32xf32> to vector<16x32xbf16>
    %c0_2 = arith.constant 0 : index
    %c0_3 = arith.constant 0 : index
    %3 = vector.load %arg2[%c0_2, %c0_3] : memref<32x96xbf16, #tpu.memory_space<vmem>>, vector<32x96xbf16>
    %cst = arith.constant dense<0.000000e+00> : vector<16x96xf32>
    %4 = tpu.matmul %2, %3, %cst {dimension_numbers = #tpu.dot_dimension_numbers<[1], [0], [0], [1], [0, 0, 1, 1], [], []>} : vector<16x32xbf16>, vector<32x96xbf16>, vector<16x96xf32> -> vector<16x96xf32>
    %5 = vector.extract_strided_slice %4 {offsets = [0, 0], sizes = [16, 32], strides = [1, 1]} : vector<16x96xf32> to vector<16x32xf32>
    %6 = vector.extract_strided_slice %4 {offsets = [0, 32], sizes = [16, 32], strides = [1, 1]} : vector<16x96xf32> to vector<16x32xf32>
    %7 = vector.extract_strided_slice %4 {offsets = [0, 64], sizes = [16, 32], strides = [1, 1]} : vector<16x96xf32> to vector<16x32xf32>
    %c0_4 = arith.constant 0 : index
    %c0_5 = arith.constant 0 : index
    %8 = vector.load %arg5[%c0_4, %c0_5] : memref<8x32xf32, #tpu.memory_space<vmem>>, vector<8x32xf32>
    %9 = vector.shape_cast %5 : vector<16x32xf32> to vector<1x16x32xf32>
    %10 = vector.shape_cast %8 : vector<8x32xf32> to vector<8x1x32xf32>
    %11 = vector.broadcast %9 : vector<1x16x32xf32> to vector<8x16x32xf32>
    %12 = vector.broadcast %10 : vector<8x1x32xf32> to vector<8x16x32xf32>
    %13 = arith.mulf %11, %12 : vector<8x16x32xf32>
    %14 = vector.shape_cast %13 : vector<8x16x32xf32> to vector<128x32xf32>
    %15 = arith.truncf %14 : vector<128x32xf32> to vector<128x32xbf16>
    %16 = arith.truncf %6 : vector<16x32xf32> to vector<16x32xbf16>
    %cst_6 = arith.constant dense<0.000000e+00> : vector<128x16xf32>
    %17 = tpu.matmul %15, %16, %cst_6 {dimension_numbers = #tpu.dot_dimension_numbers<[1], [1], [0], [0], [0, 0, 1, 0], [], []>} : vector<128x32xbf16>, vector<16x32xbf16>, vector<128x16xf32> -> vector<128x16xf32>
    %cst_7 = arith.constant dense<0xFF800000> : vector<128xf32>
    %18 = vector.multi_reduction <maximumf>, %17, %cst_7 [1] : vector<128x16xf32> to vector<128xf32>
    %19 = vector.shape_cast %18 : vector<128xf32> to vector<128x1xf32>
    %20 = vector.broadcast %19 : vector<128x1xf32> to vector<128x16xf32>
    %21 = arith.subf %17, %20 : vector<128x16xf32>
    %22 = math.exp %21 : vector<128x16xf32>
    %cst_8 = arith.constant dense<0.000000e+00> : vector<128xf32>
    %23 = vector.multi_reduction <add>, %22, %cst_8 [1] : vector<128x16xf32> to vector<128xf32>
    %24 = vector.shape_cast %23 : vector<128xf32> to vector<128x1xf32>
    %c0_9 = arith.constant 0 : index
    %c0_10 = arith.constant 0 : index
    %25 = vector.load %arg7[%c0_9, %c0_10] : memref<128x1xf32, #tpu.memory_space<vmem>>, vector<128x1xf32>
    %26 = vector.broadcast %25 : vector<128x1xf32> to vector<128x16xf32>
    %27 = arith.mulf %26, %22 : vector<128x16xf32>
    %c0_11 = arith.constant 0 : index
    %c0_12 = arith.constant 0 : index
    %28 = vector.load %arg6[%c0_11, %c0_12] : memref<128x16xf32, #tpu.memory_space<vmem>>, vector<128x16xf32>
    %29 = vector.broadcast %24 : vector<128x1xf32> to vector<128x16xf32>
    %30 = arith.mulf %28, %29 : vector<128x16xf32>
    %31 = arith.addf %27, %30 : vector<128x16xf32>
    %cst_13 = arith.constant dense<0.000000e+00> : vector<128xf32>
    %32 = vector.multi_reduction <add>, %31, %cst_13 [1] : vector<128x16xf32> to vector<128xf32>
    %33 = vector.shape_cast %32 : vector<128xf32> to vector<128x1xf32>
    %34 = tpu.reciprocal %33 {approx = true} : vector<128x1xf32> -> vector<128x1xf32>
    %35 = vector.broadcast %34 : vector<128x1xf32> to vector<128x16xf32>
    %36 = arith.mulf %31, %35 : vector<128x16xf32>
    %37 = arith.truncf %36 : vector<128x16xf32> to vector<128x16xbf16>
    %38 = arith.truncf %7 : vector<16x32xf32> to vector<16x32xbf16>
    %cst_14 = arith.constant dense<0.000000e+00> : vector<128x32xf32>
    %39 = tpu.matmul %37, %38, %cst_14 {dimension_numbers = #tpu.dot_dimension_numbers<[1], [0], [0], [1], [0, 0, 1, 1], [], []>} : vector<128x16xbf16>, vector<16x32xbf16>, vector<128x32xf32> -> vector<128x32xf32>
    %40 = vector.shape_cast %39 : vector<128x32xf32> to vector<8x16x32xf32>
    %41 = vector.shape_cast %8 : vector<8x32xf32> to vector<8x1x32xf32>
    %42 = vector.broadcast %41 : vector<8x1x32xf32> to vector<8x16x32xf32>
    %43 = arith.mulf %40, %42 : vector<8x16x32xf32>
    %cst_15 = arith.constant dense<0.000000e+00> : vector<16x32xf32>
    %44 = vector.multi_reduction <add>, %43, %cst_15 [0] : vector<8x16x32xf32> to vector<16x32xf32>
    %45 = arith.truncf %44 : vector<16x32xf32> to vector<16x32xbf16>
    %c0_16 = arith.constant 0 : index
    %c0_17 = arith.constant 0 : index
    %46 = vector.load %arg3[%c0_16, %c0_17] : memref<32x32xbf16, #tpu.memory_space<vmem>>, vector<32x32xbf16>
    %cst_18 = arith.constant dense<0.000000e+00> : vector<16x32xf32>
    %47 = tpu.matmul %45, %46, %cst_18 {dimension_numbers = #tpu.dot_dimension_numbers<[1], [0], [0], [1], [0, 0, 1, 1], [], []>} : vector<16x32xbf16>, vector<32x32xbf16>, vector<16x32xf32> -> vector<16x32xf32>
    %c0_19 = arith.constant 0 : index
    %c0_20 = arith.constant 0 : index
    %48 = vector.load %arg4[%c0_19, %c0_20] : memref<1x32xf32, #tpu.memory_space<vmem>>, vector<1x32xf32>
    %49 = vector.broadcast %48 : vector<1x32xf32> to vector<16x32xf32>
    %50 = arith.addf %47, %49 : vector<16x32xf32>
    %c0_21 = arith.constant 0 : index
    %c0_22 = arith.constant 0 : index
    %c0_23 = arith.constant 0 : index
    %51 = vector.load %arg8[%c0_21, %c0_22, %c0_23] : memref<1x16x32xf32, #tpu.memory_space<vmem>>, vector<1x16x32xf32>
    %52 = vector.shape_cast %51 : vector<1x16x32xf32> to vector<16x32xf32>
    %53 = vector.shape_cast %50 : vector<16x32xf32> to vector<1x16x32xf32>
    tpu.vector_store %arg8[%c0_21, %c0_22, %c0_23], %53 {strides = array<i32>} : memref<1x16x32xf32, #tpu.memory_space<vmem>>, vector<1x16x32xf32>,
    return
  }
  func.func @transform_0(%arg0: i32) -> (i32, i32, i32) {
    %c0_i32 = arith.constant 0 : i32
    %c0_i32_0 = arith.constant 0 : i32
    %c0_i32_1 = arith.constant 0 : i32
    return %arg0, %c0_i32, %c0_i32_0 : i32, i32, i32
  }
  func.func @transform_1(%arg0: i32) -> (i32, i32) {
    %c0_i32 = arith.constant 0 : i32
    %c0_i32_0 = arith.constant 0 : i32
    %c0_i32_1 = arith.constant 0 : i32
    return %c0_i32, %c0_i32_0 : i32, i32
  }
  func.func @transform_2(%arg0: i32) -> (i32, i32) {
    %c0_i32 = arith.constant 0 : i32
    %c0_i32_0 = arith.constant 0 : i32
    %c0_i32_1 = arith.constant 0 : i32
    return %c0_i32, %c0_i32_0 : i32, i32
  }
  func.func @transform_3(%arg0: i32) -> (i32, i32) {
    %c0_i32 = arith.constant 0 : i32
    %c0_i32_0 = arith.constant 0 : i32
    %c0_i32_1 = arith.constant 0 : i32
    return %c0_i32, %c0_i32_0 : i32, i32
  }
  func.func @transform_4(%arg0: i32) -> (i32, i32) {
    %c0_i32 = arith.constant 0 : i32
    %c0_i32_0 = arith.constant 0 : i32
    %c0_i32_1 = arith.constant 0 : i32
    return %c0_i32, %c0_i32_0 : i32, i32
  }
  func.func @transform_5(%arg0: i32) -> (i32, i32) {
    %c0_i32 = arith.constant 0 : i32
    %c0_i32_0 = arith.constant 0 : i32
    %c0_i32_1 = arith.constant 0 : i32
    return %c0_i32, %c0_i32_0 : i32, i32
  }
  func.func @transform_6(%arg0: i32) -> (i32, i32) {
    %c0_i32 = arith.constant 0 : i32
    %c0_i32_0 = arith.constant 0 : i32
    %c0_i32_1 = arith.constant 0 : i32
    return %c0_i32, %c0_i32_0 : i32, i32
  }
  func.func @transform_7(%arg0: i32) -> (i32, i32, i32) {
    %c0_i32 = arith.constant 0 : i32
    %c0_i32_0 = arith.constant 0 : i32
    %c0_i32_1 = arith.constant 0 : i32
    return %arg0, %c0_i32, %c0_i32_0 : i32, i32, i32
  }
}

</mosaic_0001>

<llo_original>
// kernel: tpu_custom_call.1
$region0: #{tpu_custom_call.1}
  #allocation0 [shape = 'u32[]', space=smem, size = 0x4, offset = 0x4, fixed_abs, tag = 'smem constant byte address 0x4 - core index']
  #allocation1 [shape = 'u32[144,128]{1,0:T(1,128)}', space=vmem, size = 0x12000, scoped, tag = 'internal scratch']
  %s0 = inlined_call_operand.vmem [shape: f32[2,16,32], index: 0, kind: input, shape index: {}]
  %s1 = inlined_call_operand.vmem [shape: bf16[32,96], index: 1, kind: input, shape index: {}]
  %s2 = inlined_call_operand.vmem [shape: bf16[32,32], index: 2, kind: input, shape index: {}]
  %s3 = inlined_call_operand.vmem [shape: f32[1,32], index: 3, kind: input, shape index: {}]
  %s4 = inlined_call_operand.vmem [shape: f32[8,32], index: 4, kind: input, shape index: {}]
  %s5 = inlined_call_operand.vmem [shape: f32[128,16], index: 5, kind: input, shape index: {}]
  %s6 = inlined_call_operand.vmem [shape: f32[128,1], index: 6, kind: input, shape index: {}]
  %s7 = inlined_call_operand.hbm [shape: f32[2,16,32], index: 7, kind: output, shape index: {}]
  %s8 = sld [smem:[#allocation0]]
  $region61: #{tpu_custom_call.1} parent=0
    _
  %s10 = ssub.s32 1, %s8
  %s11 = scalar_select 0, %s10, %s8
  $region1: #{tpu_custom_call.1} parent=0
    #allocation2 [shape = 'u8[16384]{0}', space=vmem, size = 0x4000, scoped, tag = 'output window, operand 0']
    #allocation3 [shape = 's32[2]{0}', space=sflag, size = 0x8, scoped, tag = 'scoped memory for tpu_custom_call.1']
    %12 = vsyncpa [#allocation3], 0
    %s13 = scalar_lea.sflag [#allocation3], 1
    %14 = vsyncpa %s13, 0
    loop: start=0, step=1, limit=4
    $region2: #{tpu_custom_call.1} parent=1 // loop_pre_header
      _
    $region3: #{tpu_custom_call.1} parent=1 // loop_header
      %s16 = sphi 0, %s20
      %p17 = scmp.ge.s32.totalorder %s16, 4
      %s26 = sphi 0, %s28
      %s29 = sphi 0, %s26
      %s30 = sphi 0, %s29
      %s46 = sphi 0, %s30
      %s50 = sphi 0, %s50
      %s52 = sphi 0, %s50
      %s53 = sphi 0, %s52
      %s67 = sphi 0, %s53
      %s71 = sphi 0, %s71
      %s73 = sphi 0, %s71
      %s74 = sphi 0, %s73
      %s88 = sphi 0, %s74
      %s92 = sphi 0, %s92
      %s94 = sphi 0, %s92
      %s95 = sphi 0, %s94
      %s109 = sphi 0, %s95
      %s113 = sphi 0, %s113
      %s115 = sphi 0, %s113
      %s116 = sphi 0, %s115
      %s130 = sphi 0, %s116
      %s134 = sphi 0, %s134
      %s136 = sphi 0, %s134
      %s137 = sphi 0, %s136
      %s151 = sphi 0, %s137
      %s155 = sphi 0, %s155
      %s157 = sphi 0, %s155
      %s158 = sphi 0, %s157
      %s172 = sphi 0, %s158
      %s178 = sphi 0, %s180
      %s181 = sphi 0, %s178
      %s182 = sphi 0, %s181
      %s198 = sphi 0, %s182
    $region4: #{tpu_custom_call.1} parent=1 // loop_header_branch
      %19 = sbr.rel (%p17) target = $region8
    $region5: #{tpu_custom_call.1} parent=1 // loop_body
      %s21 = ssub.s32 %s16, 1
      %s22 = ssub.s32 %s16, 2
      %s23 = sadd.s32 %s16, 1
      %s24 = ssub.s32 %s16, %s23
      %p25 = scmp.eq.s32.totalorder %s24, 0
      %s27 = sadd.s32 %s26, 1
      %s28 = scalar_select %p25, %s26, %s27
      %p31 = pneg %p25
      %p32 = scmp.eq.s32.totalorder %s16, 1
      %p33 = por %p31, %p32
      %p34 = scmp.ne.s32.totalorder %s26, %s29
      %p35 = scmp.eq.s32.totalorder %s16, 0
      %p36 = por %p34, %p35
      %p37 = scmp.ne.s32.totalorder %s26, %s29
      %p38 = scmp.eq.s32.totalorder %s21, 1
      %p39 = por %p37, %p38
      %p40 = scmp.ne.s32.totalorder %s29, %s30
      %p41 = scmp.eq.s32.totalorder %s21, 0
      %p42 = por %p40, %p41
      %p43 = scmp.ne.s32.totalorder %s29, %s30
      %p44 = scmp.eq.s32.totalorder %s22, 1
      %p45 = por %p43, %p44
      %p47 = scmp.ne.s32.totalorder %s30, %s46
      %p48 = scmp.eq.s32.totalorder %s22, 0
      %p49 = por %p47, %p48
      %s51 = sadd.s32 %s50, 1
      %p54 = scmp.eq.s32.totalorder %s16, 1
      %p55 = scmp.ne.s32.totalorder %s50, %s52
      %p56 = scmp.eq.s32.totalorder %s16, 0
      %p57 = por %p55, %p56
      %p58 = scmp.ne.s32.totalorder %s50, %s52
      %p59 = scmp.eq.s32.totalorder %s21, 1
      %p60 = por %p58, %p59
      %p61 = scmp.ne.s32.totalorder %s52, %s53
      %p62 = scmp.eq.s32.totalorder %s21, 0
      %p63 = por %p61, %p62
      %p64 = scmp.ne.s32.totalorder %s52, %s53
      %p65 = scmp.eq.s32.totalorder %s22, 1
      %p66 = por %p64, %p65
      %p68 = scmp.ne.s32.totalorder %s53, %s67
      %p69 = scmp.eq.s32.totalorder %s22, 0
      %p70 = por %p68, %p69
      %s72 = sadd.s32 %s71, 1
      %p75 = scmp.eq.s32.totalorder %s16, 1
      %p76 = scmp.ne.s32.totalorder %s71, %s73
      %p77 = scmp.eq.s32.totalorder %s16, 0
      %p78 = por %p76, %p77
      %p79 = scmp.ne.s32.totalorder %s71, %s73
      %p80 = scmp.eq.s32.totalorder %s21, 1
      %p81 = por %p79, %p80
      %p82 = scmp.ne.s32.totalorder %s73, %s74
      %p83 = scmp.eq.s32.totalorder %s21, 0
      %p84 = por %p82, %p83
      %p85 = scmp.ne.s32.totalorder %s73, %s74
      %p86 = scmp.eq.s32.totalorder %s22, 1
      %p87 = por %p85, %p86
      %p89 = scmp.ne.s32.totalorder %s74, %s88
      %p90 = scmp.eq.s32.totalorder %s22, 0
      %p91 = por %p89, %p90
      %s93 = sadd.s32 %s92, 1
      %p96 = scmp.eq.s32.totalorder %s16, 1
      %p97 = scmp.ne.s32.totalorder %s92, %s94
      %p98 = scmp.eq.s32.totalorder %s16, 0
      %p99 = por %p97, %p98
      %p100 = scmp.ne.s32.totalorder %s92, %s94
      %p101 = scmp.eq.s32.totalorder %s21, 1
      %p102 = por %p100, %p101
      %p103 = scmp.ne.s32.totalorder %s94, %s95
      %p104 = scmp.eq.s32.totalorder %s21, 0
      %p105 = por %p103, %p104
      %p106 = scmp.ne.s32.totalorder %s94, %s95
      %p107 = scmp.eq.s32.totalorder %s22, 1
      %p108 = por %p106, %p107
      %p110 = scmp.ne.s32.totalorder %s95, %s109
      %p111 = scmp.eq.s32.totalorder %s22, 0
      %p112 = por %p110, %p111
      %s114 = sadd.s32 %s113, 1
      %p117 = scmp.eq.s32.totalorder %s16, 1
      %p118 = scmp.ne.s32.totalorder %s113, %s115
      %p119 = scmp.eq.s32.totalorder %s16, 0
      %p120 = por %p118, %p119
      %p121 = scmp.ne.s32.totalorder %s113, %s115
      %p122 = scmp.eq.s32.totalorder %s21, 1
      %p123 = por %p121, %p122
      %p124 = scmp.ne.s32.totalorder %s115, %s116
      %p125 = scmp.eq.s32.totalorder %s21, 0
      %p126 = por %p124, %p125
      %p127 = scmp.ne.s32.totalorder %s115, %s116
      %p128 = scmp.eq.s32.totalorder %s22, 1
      %p129 = por %p127, %p128
      %p131 = scmp.ne.s32.totalorder %s116, %s130
      %p132 = scmp.eq.s32.totalorder %s22, 0
      %p133 = por %p131, %p132
      %s135 = sadd.s32 %s134, 1
      %p138 = scmp.eq.s32.totalorder %s16, 1
      %p139 = scmp.ne.s32.totalorder %s134, %s136
      %p140 = scmp.eq.s32.totalorder %s16, 0
      %p141 = por %p139, %p140
      %p142 = scmp.ne.s32.totalorder %s134, %s136
      %p143 = scmp.eq.s32.totalorder %s21, 1
      %p144 = por %p142, %p143
      %p145 = scmp.ne.s32.totalorder %s136, %s137
      %p146 = scmp.eq.s32.totalorder %s21, 0
      %p147 = por %p145, %p146
      %p148 = scmp.ne.s32.totalorder %s136, %s137
      %p149 = scmp.eq.s32.totalorder %s22, 1
      %p150 = por %p148, %p149
      %p152 = scmp.ne.s32.totalorder %s137, %s151
      %p153 = scmp.eq.s32.totalorder %s22, 0
      %p154 = por %p152, %p153
      %s156 = sadd.s32 %s155, 1
      %p159 = scmp.eq.s32.totalorder %s16, 1
      %p160 = scmp.ne.s32.totalorder %s155, %s157
      %p161 = scmp.eq.s32.totalorder %s16, 0
      %p162 = por %p160, %p161
      %p163 = scmp.ne.s32.totalorder %s155, %s157
      %p164 = scmp.eq.s32.totalorder %s21, 1
      %p165 = por %p163, %p164
      %p166 = scmp.ne.s32.totalorder %s157, %s158
      %p167 = scmp.eq.s32.totalorder %s21, 0
      %p168 = por %p166, %p167
      %p169 = scmp.ne.s32.totalorder %s157, %s158
      %p170 = scmp.eq.s32.totalorder %s22, 1
      %p171 = por %p169, %p170
      %p173 = scmp.ne.s32.totalorder %s158, %s172
      %p174 = scmp.eq.s32.totalorder %s22, 0
      %p175 = por %p173, %p174
      %s176 = ssub.s32 %s16, %s23
      %p177 = scmp.eq.s32.totalorder %s176, 0
      %s179 = sadd.s32 %s178, 1
      %s180 = scalar_select %p177, %s178, %s179
      %p183 = pneg %p177
      %p184 = scmp.eq.s32.totalorder %s16, 1
      %p185 = por %p183, %p184
      %p186 = scmp.ne.s32.totalorder %s178, %s181
      %p187 = scmp.eq.s32.totalorder %s16, 0
      %p188 = por %p186, %p187
      %p189 = scmp.ne.s32.totalorder %s178, %s181
      %p190 = scmp.eq.s32.totalorder %s21, 1
      %p191 = por %p189, %p190
      %p192 = scmp.ne.s32.totalorder %s181, %s182
      %p193 = scmp.eq.s32.totalorder %s21, 0
      %p194 = por %p192, %p193
      %p195 = scmp.ne.s32.totalorder %s181, %s182
      %p196 = scmp.eq.s32.totalorder %s22, 1
      %p197 = por %p195, %p196
      %p199 = scmp.ne.s32.totalorder %s182, %s198
      %p200 = scmp.eq.s32.totalorder %s22, 0
      %p201 = por %p199, %p200
      %p202 = scmp.le.s32.totalorder 1, %s16
      %p203 = scmp.lt.s32.totalorder %s16, 3
      %p204 = pnand %p202, %p203
      %p205 = pneg %p204
      // Predicated region
      $region9: #{tpu_custom_call.1} parent=5 // pred_check
        _
      $region10: #{tpu_custom_call.1} parent=5 // pred_check_branch
        %207 = sbr.rel (%p204) target = $region12
      $region11: #{tpu_custom_call.1} parent=5 // pred_region
        %s208 = ssub.s32 %s16, 1
        // Predicated region
        $region13: #{tpu_custom_call.1} parent=11 // pred_check
          %p209 = pneg %p63
        $region14: #{tpu_custom_call.1} parent=11 // pred_check_branch
          %211 = sbr.rel (%p209) target = $region16
        $region15: #{tpu_custom_call.1} parent=11 // pred_region
          _
        $region16: #{tpu_custom_call.1} parent=11 // pred_fallthru
          _
        // Predicated region
        $region17: #{tpu_custom_call.1} parent=11 // pred_check
          %p212 = pneg %p84
        $region18: #{tpu_custom_call.1} parent=11 // pred_check_branch
          %214 = sbr.rel (%p212) target = $region20
        $region19: #{tpu_custom_call.1} parent=11 // pred_region
          _
        $region20: #{tpu_custom_call.1} parent=11 // pred_fallthru
          _
        // Predicated region
        $region21: #{tpu_custom_call.1} parent=11 // pred_check
          %p215 = pneg %p105
        $region22: #{tpu_custom_call.1} parent=11 // pred_check_branch
          %217 = sbr.rel (%p215) target = $region24
        $region23: #{tpu_custom_call.1} parent=11 // pred_region
          _
        $region24: #{tpu_custom_call.1} parent=11 // pred_fallthru
          _
        // Predicated region
        $region25: #{tpu_custom_call.1} parent=11 // pred_check
          %p218 = pneg %p126
        $region26: #{tpu_custom_call.1} parent=11 // pred_check_branch
          %220 = sbr.rel (%p218) target = $region28
        $region27: #{tpu_custom_call.1} parent=11 // pred_region
          _
        $region28: #{tpu_custom_call.1} parent=11 // pred_fallthru
          _
        // Predicated region
        $region29: #{tpu_custom_call.1} parent=11 // pred_check
          %p221 = pneg %p147
        $region30: #{tpu_custom_call.1} parent=11 // pred_check_branch
          %223 = sbr.rel (%p221) target = $region32
        $region31: #{tpu_custom_call.1} parent=11 // pred_region
          _
        $region32: #{tpu_custom_call.1} parent=11 // pred_fallthru
          _
        // Predicated region
        $region33: #{tpu_custom_call.1} parent=11 // pred_check
          %p224 = pneg %p168
        $region34: #{tpu_custom_call.1} parent=11 // pred_check_branch
          %226 = sbr.rel (%p224) target = $region36
        $region35: #{tpu_custom_call.1} parent=11 // pred_region
          _
        $region36: #{tpu_custom_call.1} parent=11 // pred_fallthru
          _
      $region12: #{tpu_custom_call.1} parent=5 // pred_fallthru
        _
      %p227 = scmp.lt.s32.totalorder %s16, 2
      // Predicated region
      $region37: #{tpu_custom_call.1} parent=5 // pred_check
        %p228 = pneg %p227
      $region38: #{tpu_custom_call.1} parent=5 // pred_check_branch
        %230 = sbr.rel (%p228) target = $region40
      $region39: #{tpu_custom_call.1} parent=5 // pred_region
        // Predicated region
        $region41: #{tpu_custom_call.1} parent=39 // pred_check
          %p231 = pneg %p36
        $region42: #{tpu_custom_call.1} parent=39 // pred_check_branch
          %233 = sbr.rel (%p231) target = $region44
        $region43: #{tpu_custom_call.1} parent=39 // pred_region
          %p234 = scmp.lt.s32.totalorder %s16, 1
          %s235 = scalar_select %p234, %s16, 1
          %s236 = smul.addr %s235, 2
          %s237 = smul.addr %s236, 8
          %s238 = scalar_lea.vmem %s0, %s237
        $region44: #{tpu_custom_call.1} parent=39 // pred_fallthru
          _
      $region40: #{tpu_custom_call.1} parent=5 // pred_fallthru
        _
      %p239 = scmp.le.s32.totalorder 1, %s16
      %p240 = scmp.lt.s32.totalorder %s16, 3
      %p241 = pnand %p239, %p240
      %p242 = pneg %p241
      // Predicated region
      $region45: #{tpu_custom_call.1} parent=5 // pred_check
        _
      $region46: #{tpu_custom_call.1} parent=5 // pred_check_branch
        %244 = sbr.rel (%p241) target = $region48
      $region47: #{tpu_custom_call.1} parent=5 // pred_region
        %s245 = ssub.s32 %s16, 1
        %p246 = scmp.lt.s32.totalorder %s21, 1
        %s247 = scalar_select %p246, %s21, 1
        %s248 = smul.addr %s247, 2
        %s249 = smul.addr %s248, 8
        %s250 = scalar_lea.vmem %s0, %s249
        %p251 = pneg %p42
        %p252 = pneg %p39
        %p253 = pneg %p63
        %p254 = pneg %p60
        %p255 = pneg %p84
        %p256 = pneg %p81
        %p257 = pneg %p105
        %p258 = pneg %p102
        %p259 = pneg %p126
        %p260 = pneg %p123
        %p261 = pneg %p147
        %p262 = pneg %p144
        %p263 = pneg %p168
        %p264 = pneg %p165
        %p265 = pneg %p194
        %p266 = pneg %p191
        %s267 = sand.u32 %s181, 1
        %s268 = scalar_lea.sflag [#allocation3], %s267
        %s269 = sand.u32 %s181, 1
        %s270 = smul.addr %s269, 16
        %s271 = scalar_lea.vmem [#allocation2], %s270
        %p272 = scmp.lt.s32.totalorder %s21, 1
        %s273 = scalar_select %p272, %s21, 1
        %s274 = smul.addr %s273, 2
        %s275 = smul.addr %s274, 8
        %s276 = scalar_lea.vmem %s0, %s275
        %v278 = vld [vmem:[%s276] sm:$0xff]
        %v279 = vld [vmem:[%s276 + $0x8] sm:$0xff]
        %v280 = vpack.c.bf16 %v279, %v278
        %v281 = vld [vmem:[%s1] sm:$0xf]
        %v282 = vld [vmem:[%s1 + $0x4] sm:$0xf]
        %v283 = vld [vmem:[%s1 + $0x8] sm:$0xf]
        %v284 = vld [vmem:[%s1 + $0xc] sm:$0xf]
        %v289 = vunpack.c.l.b16 %v281
        %v290 = vunpack.c.l.b16 %v282
        %v291 = vunpack.c.l.b16 %v283
        %v292 = vunpack.c.l.b16 %v284
        %v293 = vpack.c.b16 %v290, %v289
        %v294 = vpack.c.b16 %v292, %v291
        %vm297 = vcmask 261120
        %v299 = vsel %vm297, %v280, 0
        %301 = vmatprep.subr.bf16.mxu0 0
        %302 = vmatpush1.bf16.msra.mxu0 0
        %303 = vmatprep.subr.bf16.mxu0 0
        %304 = vmatpush1.bf16.msra.mxu0 0
        %305 = vmatprep.subr.bf16.mxu0 0
        %306 = vmatpush1.bf16.msra.mxu0 0
        %307 = vmatprep.subr.bf16.mxu0 0
        %308 = vmatpush1.bf16.msra.mxu0 0
        %309 = vmatprep.subr.bf16.mxu0 0
        %310 = vmatpush1.bf16.msra.mxu0 0
        %311 = vmatprep.subr.bf16.mxu0 0
        %312 = vmatpush1.bf16.msra.mxu0 0
        %313 = vmatprep.subr.bf16.mxu0 0
        %314 = vmatpush1.bf16.msra.mxu0 %v294
        %315 = vmatprep.subr.bf16.mxu0 0
        %316 = vmatpush1.bf16.msra.mxu0 %v293
        %317 = vmatprep.subr.bf16.mxu0 0
        %318 = vmatpush2.bf16.msra.mxu0 0
        %319 = vmatprep.subr.bf16.mxu0 0
        %320 = vmatpush2.bf16.msra.mxu0 0
        %321 = vmatprep.subr.bf16.mxu0 0
        %322 = vmatpush2.bf16.msra.mxu0 0
        %323 = vmatprep.subr.bf16.mxu0 0
        %324 = vmatpush2.bf16.msra.mxu0 0
        %325 = vmatprep.subr.bf16.mxu0 0
        %326 = vmatpush2.bf16.msra.mxu0 0
        %327 = vmatprep.subr.bf16.mxu0 0
        %328 = vmatpush2.bf16.msra.mxu0 0
        %329 = vmatprep.subr.bf16.mxu0 0
        %330 = vmatpush2.bf16.msra.mxu0 0
        %331 = vmatprep.subr.bf16.mxu0 0
        %332 = vmatpush2.bf16.msra.mxu0 0
        %333 = vmatprep.mubr.bf16.mxu0 0
        %334 = vmatmul.mubr.bf16.gmra.mxu0 %v299
        %v335 = vpop.f32.mrf.mxu0
        %v336 = vadd.f32 0.0, %v335
        %v337 = vpop.f32.mrf.mxu0
        %v338 = vpop.f32.mrf.mxu0
        %v339 = vadd.f32 0.0, %v338
        %v340 = vpop.f32.mrf.mxu0
        %341 = vdwg.mxu0
        %v342 = vld [vmem:[%s4] sm:$0xff]
        %v344 = vcombine.high %v342, %v342
        %v346 = vunpack.c.l.s4 1966171168
        %v347 = vunpack.c.0.s8 %v346
        %v348 = vlaneseq
        %v349 = vshrl.u32 %v348, 7
        %v350 = vsub.s32 %v347, %v349
        %v351 = vrot.slane %v342, %v350
        %v353 = vunpack.c.l.s4 1966171168
        %v354 = vunpack.c.0.s8 %v353
        %v355 = vlaneseq
        %v356 = vshrl.u32 %v355, 7
        %v357 = vsub.s32 %v354, %v356
        %v358 = vrot.slane %v344, %v357
        %v359 = vcombine.high %v351, %v351
        %v360 = vcombine.high %v358, %v358
        %v362 = vunpack.c.l.s4 1966171168
        %v363 = vunpack.c.0.s8 %v362
        %v364 = vlaneseq
        %v365 = vshrl.u32 %v364, 7
        %v366 = vsub.s32 %v363, %v365
        %v367 = vrot.slane %v351, %v366
        %v369 = vunpack.c.l.s4 1966171168
        %v370 = vunpack.c.0.s8 %v369
        %v371 = vlaneseq
        %v372 = vshrl.u32 %v371, 7
        %v373 = vsub.s32 %v370, %v372
        %v374 = vrot.slane %v358, %v373
        %v376 = vunpack.c.l.s4 1966171168
        %v377 = vunpack.c.0.s8 %v376
        %v378 = vlaneseq
        %v379 = vshrl.u32 %v378, 7
        %v380 = vsub.s32 %v377, %v379
        %v381 = vrot.slane %v359, %v380
        %v383 = vunpack.c.l.s4 1966171168
        %v384 = vunpack.c.0.s8 %v383
        %v385 = vlaneseq
        %v386 = vshrl.u32 %v385, 7
        %v387 = vsub.s32 %v384, %v386
        %v388 = vrot.slane %v360, %v387
        %v389 = vcombine.high %v367, %v367
        %v390 = vcombine.high %v374, %v374
        %v391 = vcombine.high %v381, %v381
        %v392 = vcombine.high %v388, %v388
        %v393 = vlaneseq
        %v394 = vshrl.u32 %v393, 7
        %v395 = vsub.s32 0, %v394
        %v396 = vrot.slane %v367, %v395
        %v397 = vlaneseq
        %v398 = vshrl.u32 %v397, 7
        %v399 = vsub.s32 0, %v398
        %v400 = vrot.slane %v381, %v399
        %v401 = vlaneseq
        %v402 = vshrl.u32 %v401, 7
        %v403 = vsub.s32 0, %v402
        %v404 = vrot.slane %v389, %v403
        %v405 = vlaneseq
        %v406 = vshrl.u32 %v405, 7
        %v407 = vsub.s32 0, %v406
        %v408 = vrot.slane %v391, %v407
        %v409 = vlaneseq
        %v410 = vshrl.u32 %v409, 7
        %v411 = vsub.s32 0, %v410
        %v412 = vrot.slane %v374, %v411
        %v413 = vlaneseq
        %v414 = vshrl.u32 %v413, 7
        %v415 = vsub.s32 0, %v414
        %v416 = vrot.slane %v388, %v415
        %v417 = vlaneseq
        %v418 = vshrl.u32 %v417, 7
        %v419 = vsub.s32 0, %v418
        %v420 = vrot.slane %v390, %v419
        %v421 = vlaneseq
        %v422 = vshrl.u32 %v421, 7
        %v423 = vsub.s32 0, %v422
        %v424 = vrot.slane %v392, %v423
        %v433 = vmul.f32 %v336, %v396
        %v434 = vmul.f32 %v339, %v396
        %v435 = vmul.f32 %v336, %v400
        %v436 = vmul.f32 %v339, %v400
        %v437 = vmul.f32 %v336, %v404
        %v438 = vmul.f32 %v339, %v404
        %v439 = vmul.f32 %v336, %v408
        %v440 = vmul.f32 %v339, %v408
        %v441 = vmul.f32 %v336, %v412
        %v442 = vmul.f32 %v339, %v412
        %v443 = vmul.f32 %v336, %v416
        %v444 = vmul.f32 %v339, %v416
        %v445 = vmul.f32 %v336, %v420
        %v446 = vmul.f32 %v339, %v420
        %v447 = vmul.f32 %v336, %v424
        %v448 = vmul.f32 %v339, %v424
        %v449 = vpack.c.bf16 %v434, %v433
        %v450 = vpack.c.bf16 %v436, %v435
        %v451 = vpack.c.bf16 %v438, %v437
        %v452 = vpack.c.bf16 %v440, %v439
        %v453 = vpack.c.bf16 %v442, %v441
        %v454 = vpack.c.bf16 %v444, %v443
        %v455 = vpack.c.bf16 %v446, %v445
        %v456 = vpack.c.bf16 %v448, %v447
        %v457 = vpack.c.bf16 %v339, %v336
        %459 = vrot.lane.b32.xlu0 %v457, 96
        %v460 = vpop.permute.xlu0 %459
        %v462 = vsel %vm297, %v449, 0
        %v465 = vsel %vm297, %v450, 0
        %v468 = vsel %vm297, %v451, 0
        %v471 = vsel %vm297, %v452, 0
        %v474 = vsel %vm297, %v453, 0
        %v477 = vsel %vm297, %v454, 0
        %v480 = vsel %vm297, %v455, 0
        %v483 = vsel %vm297, %v456, 0
        %v486 = vsel %vm297, %v460, 0
        %488 = vmatprep.subr.bf16.mxu0 0
        %489 = vmatpush1.bf16.xpose.msra.mxu0 0
        %490 = vmatprep.subr.bf16.mxu0 0
        %491 = vmatpush1.bf16.xpose.msra.mxu0 0
        %492 = vmatprep.subr.bf16.mxu0 0
        %493 = vmatpush1.bf16.xpose.msra.mxu0 0
        %494 = vmatprep.subr.bf16.mxu0 0
        %495 = vmatpush1.bf16.xpose.msra.mxu0 0
        %496 = vmatprep.subr.bf16.mxu0 0
        %497 = vmatpush1.bf16.xpose.msra.mxu0 0
        %498 = vmatprep.subr.bf16.mxu0 0
        %499 = vmatpush1.bf16.xpose.msra.mxu0 0
        %500 = vmatprep.subr.bf16.mxu0 0
        %501 = vmatpush1.bf16.xpose.msra.mxu0 0
        %502 = vmatprep.subr.bf16.mxu0 0
        %503 = vmatpush1.bf16.xpose.msra.mxu0 %v486
        %504 = vmatprep.subr.bf16.mxu0 0
        %505 = vmatpush2.bf16.xpose.msra.mxu0 0
        %506 = vmatprep.subr.bf16.mxu0 0
        %507 = vmatpush2.bf16.xpose.msra.mxu0 0
        %508 = vmatprep.subr.bf16.mxu0 0
        %509 = vmatpush2.bf16.xpose.msra.mxu0 0
        %510 = vmatprep.subr.bf16.mxu0 0
        %511 = vmatpush2.bf16.xpose.msra.mxu0 0
        %512 = vmatprep.subr.bf16.mxu0 0
        %513 = vmatpush2.bf16.xpose.msra.mxu0 0
        %514 = vmatprep.subr.bf16.mxu0 0
        %515 = vmatpush2.bf16.xpose.msra.mxu0 0
        %516 = vmatprep.subr.bf16.mxu0 0
        %517 = vmatpush2.bf16.xpose.msra.mxu0 0
        %518 = vmatprep.subr.bf16.mxu0 0
        %519 = vmatpush2.bf16.xpose.msra.mxu0 0
        %520 = vmatprep.mubr.bf16.mxu0 0
        %521 = vmatmul.mubr.bf16.gmra.mxu0 %v462
        %v522 = vpop.f32.mrf.mxu0
        %v523 = vadd.f32 0.0, %v522
        %v524 = vpop.f32.mrf.mxu0
        %v525 = vpop.f32.mrf.mxu0
        %v526 = vadd.f32 0.0, %v525
        %v527 = vpop.f32.mrf.mxu0
        %528 = vmatprep.mubr.bf16.mxu0 0
        %529 = vmatmul.mubr.bf16.gmra.mxu0 %v465
        %v530 = vpop.f32.mrf.mxu0
        %v531 = vadd.f32 0.0, %v530
        %v532 = vpop.f32.mrf.mxu0
        %v533 = vpop.f32.mrf.mxu0
        %v534 = vadd.f32 0.0, %v533
        %v535 = vpop.f32.mrf.mxu0
        %536 = vmatprep.mubr.bf16.mxu0 0
        %537 = vmatmul.mubr.bf16.gmra.mxu0 %v468
        %v538 = vpop.f32.mrf.mxu0
        %v539 = vadd.f32 0.0, %v538
        %v540 = vpop.f32.mrf.mxu0
        %v541 = vpop.f32.mrf.mxu0
        %v542 = vadd.f32 0.0, %v541
        %v543 = vpop.f32.mrf.mxu0
        %544 = vmatprep.mubr.bf16.mxu0 0
        %545 = vmatmul.mubr.bf16.gmra.mxu0 %v471
        %v546 = vpop.f32.mrf.mxu0
        %v547 = vadd.f32 0.0, %v546
        %v548 = vpop.f32.mrf.mxu0
        %v549 = vpop.f32.mrf.mxu0
        %v550 = vadd.f32 0.0, %v549
        %v551 = vpop.f32.mrf.mxu0
        %552 = vmatprep.mubr.bf16.mxu0 0
        %553 = vmatmul.mubr.bf16.gmra.mxu0 %v474
        %v554 = vpop.f32.mrf.mxu0
        %v555 = vadd.f32 0.0, %v554
        %v556 = vpop.f32.mrf.mxu0
        %v557 = vpop.f32.mrf.mxu0
        %v558 = vadd.f32 0.0, %v557
        %v559 = vpop.f32.mrf.mxu0
        %560 = vmatprep.mubr.bf16.mxu0 0
        %561 = vmatmul.mubr.bf16.gmra.mxu0 %v477
        %v562 = vpop.f32.mrf.mxu0
        %v563 = vadd.f32 0.0, %v562
        %v564 = vpop.f32.mrf.mxu0
        %v565 = vpop.f32.mrf.mxu0
        %v566 = vadd.f32 0.0, %v565
        %v567 = vpop.f32.mrf.mxu0
        %568 = vmatprep.mubr.bf16.mxu0 0
        %569 = vmatmul.mubr.bf16.gmra.mxu0 %v480
        %v570 = vpop.f32.mrf.mxu0
        %v571 = vadd.f32 0.0, %v570
        %v572 = vpop.f32.mrf.mxu0
        %v573 = vpop.f32.mrf.mxu0
        %v574 = vadd.f32 0.0, %v573
        %v575 = vpop.f32.mrf.mxu0
        %576 = vmatprep.mubr.bf16.mxu0 0
        %577 = vmatmul.mubr.bf16.gmra.mxu0 %v483
        %v578 = vpop.f32.mrf.mxu0
        %v579 = vadd.f32 0.0, %v578
        %v580 = vpop.f32.mrf.mxu0
        %v581 = vpop.f32.mrf.mxu0
        %v582 = vadd.f32 0.0, %v581
        %v583 = vpop.f32.mrf.mxu0
        %584 = vdwg.mxu0
        %vm585 = vcmask 130048
        %v586 = vsel %vm585, %v523, -inf
        %587 = vmax.xlane.f32.xlu0 %v586
        %v588 = vpop.xlane.xlu0 %587
        %v589 = vsel %vm585, %v526, -inf
        %590 = vmax.xlane.f32.xlu0 %v589
        %v591 = vpop.xlane.xlu0 %590
        %v592 = vsel %vm585, %v531, -inf
        %593 = vmax.xlane.f32.xlu0 %v592
        %v594 = vpop.xlane.xlu0 %593
        %v595 = vsel %vm585, %v534, -inf
        %596 = vmax.xlane.f32.xlu0 %v595
        %v597 = vpop.xlane.xlu0 %596
        %v598 = vsel %vm585, %v539, -inf
        %599 = vmax.xlane.f32.xlu0 %v598
        %v600 = vpop.xlane.xlu0 %599
        %v601 = vsel %vm585, %v542, -inf
        %602 = vmax.xlane.f32.xlu0 %v601
        %v603 = vpop.xlane.xlu0 %602
        %v604 = vsel %vm585, %v547, -inf
        %605 = vmax.xlane.f32.xlu0 %v604
        %v606 = vpop.xlane.xlu0 %605
        %v607 = vsel %vm585, %v550, -inf
        %608 = vmax.xlane.f32.xlu0 %v607
        %v609 = vpop.xlane.xlu0 %608
        %v610 = vsel %vm585, %v555, -inf
        %611 = vmax.xlane.f32.xlu0 %v610
        %v612 = vpop.xlane.xlu0 %611
        %v613 = vsel %vm585, %v558, -inf
        %614 = vmax.xlane.f32.xlu0 %v613
        %v615 = vpop.xlane.xlu0 %614
        %v616 = vsel %vm585, %v563, -inf
        %617 = vmax.xlane.f32.xlu0 %v616
        %v618 = vpop.xlane.xlu0 %617
        %v619 = vsel %vm585, %v566, -inf
        %620 = vmax.xlane.f32.xlu0 %v619
        %v621 = vpop.xlane.xlu0 %620
        %v622 = vsel %vm585, %v571, -inf
        %623 = vmax.xlane.f32.xlu0 %v622
        %v624 = vpop.xlane.xlu0 %623
        %v625 = vsel %vm585, %v574, -inf
        %626 = vmax.xlane.f32.xlu0 %v625
        %v627 = vpop.xlane.xlu0 %626
        %v628 = vsel %vm585, %v579, -inf
        %629 = vmax.xlane.f32.xlu0 %v628
        %v630 = vpop.xlane.xlu0 %629
        %v631 = vsel %vm585, %v582, -inf
        %632 = vmax.xlane.f32.xlu0 %v631
        %v633 = vpop.xlane.xlu0 %632
        %v634 = vsub.f32 %v523, %v588
        %v635 = vsub.f32 %v526, %v591
        %v636 = vsub.f32 %v531, %v594
        %v637 = vsub.f32 %v534, %v597
        %v638 = vsub.f32 %v539, %v600
        %v639 = vsub.f32 %v542, %v603
        %v640 = vsub.f32 %v547, %v606
        %v641 = vsub.f32 %v550, %v609
        %v642 = vsub.f32 %v555, %v612
        %v643 = vsub.f32 %v558, %v615
        %v644 = vsub.f32 %v563, %v618
        %v645 = vsub.f32 %v566, %v621
        %v646 = vsub.f32 %v571, %v624
        %v647 = vsub.f32 %v574, %v627
        %v648 = vsub.f32 %v579, %v630
        %v649 = vsub.f32 %v582, %v633
        %v650 = vmul.f32 %v634, 1.442695
        %v651 = vpow.pop %v650
        %v652 = vmul.f32 %v635, 1.442695
        %v653 = vpow.pop %v652
        %v654 = vmul.f32 %v636, 1.442695
        %v655 = vpow.pop %v654
        %v656 = vmul.f32 %v637, 1.442695
        %v657 = vpow.pop %v656
        %v658 = vmul.f32 %v638, 1.442695
        %v659 = vpow.pop %v658
        %v660 = vmul.f32 %v639, 1.442695
        %v661 = vpow.pop %v660
        %v662 = vmul.f32 %v640, 1.442695
        %v663 = vpow.pop %v662
        %v664 = vmul.f32 %v641, 1.442695
        %v665 = vpow.pop %v664
        %v666 = vmul.f32 %v642, 1.442695
        %v667 = vpow.pop %v666
        %v668 = vmul.f32 %v643, 1.442695
        %v669 = vpow.pop %v668
        %v670 = vmul.f32 %v644, 1.442695
        %v671 = vpow.pop %v670
        %v672 = vmul.f32 %v645, 1.442695
        %v673 = vpow.pop %v672
        %v674 = vmul.f32 %v646, 1.442695
        %v675 = vpow.pop %v674
        %v676 = vmul.f32 %v647, 1.442695
        %v677 = vpow.pop %v676
        %v678 = vmul.f32 %v648, 1.442695
        %v679 = vpow.pop %v678
        %v680 = vmul.f32 %v649, 1.442695
        %v681 = vpow.pop %v680
        %v682 = vsel %vm585, %v651, 0.0
        %683 = vadd.xlane.f32.xlu0 %v682
        %v684 = vpop.xlane.xlu0 %683
        %v685 = vsel %vm585, %v653, 0.0
        %686 = vadd.xlane.f32.xlu0 %v685
        %v687 = vpop.xlane.xlu0 %686
        %v688 = vsel %vm585, %v655, 0.0
        %689 = vadd.xlane.f32.xlu0 %v688
        %v690 = vpop.xlane.xlu0 %689
        %v691 = vsel %vm585, %v657, 0.0
        %692 = vadd.xlane.f32.xlu0 %v691
        %v693 = vpop.xlane.xlu0 %692
        %v694 = vsel %vm585, %v659, 0.0
        %695 = vadd.xlane.f32.xlu0 %v694
        %v696 = vpop.xlane.xlu0 %695
        %v697 = vsel %vm585, %v661, 0.0
        %698 = vadd.xlane.f32.xlu0 %v697
        %v699 = vpop.xlane.xlu0 %698
        %v700 = vsel %vm585, %v663, 0.0
        %701 = vadd.xlane.f32.xlu0 %v700
        %v702 = vpop.xlane.xlu0 %701
        %v703 = vsel %vm585, %v665, 0.0
        %704 = vadd.xlane.f32.xlu0 %v703
        %v705 = vpop.xlane.xlu0 %704
        %v706 = vsel %vm585, %v667, 0.0
        %707 = vadd.xlane.f32.xlu0 %v706
        %v708 = vpop.xlane.xlu0 %707
        %v709 = vsel %vm585, %v669, 0.0
        %710 = vadd.xlane.f32.xlu0 %v709
        %v711 = vpop.xlane.xlu0 %710
        %v712 = vsel %vm585, %v671, 0.0
        %713 = vadd.xlane.f32.xlu0 %v712
        %v714 = vpop.xlane.xlu0 %713
        %v715 = vsel %vm585, %v673, 0.0
        %716 = vadd.xlane.f32.xlu0 %v715
        %v717 = vpop.xlane.xlu0 %716
        %v718 = vsel %vm585, %v675, 0.0
        %719 = vadd.xlane.f32.xlu0 %v718
        %v720 = vpop.xlane.xlu0 %719
        %v721 = vsel %vm585, %v677, 0.0
        %722 = vadd.xlane.f32.xlu0 %v721
        %v723 = vpop.xlane.xlu0 %722
        %v724 = vsel %vm585, %v679, 0.0
        %725 = vadd.xlane.f32.xlu0 %v724
        %v726 = vpop.xlane.xlu0 %725
        %v727 = vsel %vm585, %v681, 0.0
        %728 = vadd.xlane.f32.xlu0 %v727
        %v729 = vpop.xlane.xlu0 %728
        %v730 = vld [vmem:[%s6] sm:$0xff]
        %v731 = vld [vmem:[%s6 + $0x8] sm:$0xff]
        %v732 = vld [vmem:[%s6 + $0x10] sm:$0xff]
        %v733 = vld [vmem:[%s6 + $0x18] sm:$0xff]
        %v734 = vld [vmem:[%s6 + $0x20] sm:$0xff]
        %v735 = vld [vmem:[%s6 + $0x28] sm:$0xff]
        %v736 = vld [vmem:[%s6 + $0x30] sm:$0xff]
        %v737 = vld [vmem:[%s6 + $0x38] sm:$0xff]
        %v738 = vld [vmem:[%s6 + $0x40] sm:$0xff]
        %v739 = vld [vmem:[%s6 + $0x48] sm:$0xff]
        %v740 = vld [vmem:[%s6 + $0x50] sm:$0xff]
        %v741 = vld [vmem:[%s6 + $0x58] sm:$0xff]
        %v742 = vld [vmem:[%s6 + $0x60] sm:$0xff]
        %v743 = vld [vmem:[%s6 + $0x68] sm:$0xff]
        %v744 = vld [vmem:[%s6 + $0x70] sm:$0xff]
        %v745 = vld [vmem:[%s6 + $0x78] sm:$0xff]
        %747 = vset.pattern.permute.xlu0 0
        %748 = vperm.xlu0 %747, %v730
        %v749 = vpop.permute.xlu0 %748
        %752 = vset.pattern.permute.xlu0 0
        %753 = vperm.xlu0 %752, %v731
        %v754 = vpop.permute.xlu0 %753
        %757 = vset.pattern.permute.xlu0 0
        %758 = vperm.xlu0 %757, %v732
        %v759 = vpop.permute.xlu0 %758
        %762 = vset.pattern.permute.xlu0 0
        %763 = vperm.xlu0 %762, %v733
        %v764 = vpop.permute.xlu0 %763
        %767 = vset.pattern.permute.xlu0 0
        %768 = vperm.xlu0 %767, %v734
        %v769 = vpop.permute.xlu0 %768
        %772 = vset.pattern.permute.xlu0 0
        %773 = vperm.xlu0 %772, %v735
        %v774 = vpop.permute.xlu0 %773
        %777 = vset.pattern.permute.xlu0 0
        %778 = vperm.xlu0 %777, %v736
        %v779 = vpop.permute.xlu0 %778
        %782 = vset.pattern.permute.xlu0 0
        %783 = vperm.xlu0 %782, %v737
        %v784 = vpop.permute.xlu0 %783
        %787 = vset.pattern.permute.xlu0 0
        %788 = vperm.xlu0 %787, %v738
        %v789 = vpop.permute.xlu0 %788
        %792 = vset.pattern.permute.xlu0 0
        %793 = vperm.xlu0 %792, %v739
        %v794 = vpop.permute.xlu0 %793
        %797 = vset.pattern.permute.xlu0 0
        %798 = vperm.xlu0 %797, %v740
        %v799 = vpop.permute.xlu0 %798
        %802 = vset.pattern.permute.xlu0 0
        %803 = vperm.xlu0 %802, %v741
        %v804 = vpop.permute.xlu0 %803
        %807 = vset.pattern.permute.xlu0 0
        %808 = vperm.xlu0 %807, %v742
        %v809 = vpop.permute.xlu0 %808
        %812 = vset.pattern.permute.xlu0 0
        %813 = vperm.xlu0 %812, %v743
        %v814 = vpop.permute.xlu0 %813
        %817 = vset.pattern.permute.xlu0 0
        %818 = vperm.xlu0 %817, %v744
        %v819 = vpop.permute.xlu0 %818
        %822 = vset.pattern.permute.xlu0 0
        %823 = vperm.xlu0 %822, %v745
        %v824 = vpop.permute.xlu0 %823
        %v826 = vmul.f32 %v749, %v651
        %v827 = vmul.f32 %v754, %v653
        %v828 = vmul.f32 %v759, %v655
        %v829 = vmul.f32 %v764, %v657
        %v830 = vmul.f32 %v769, %v659
        %v831 = vmul.f32 %v774, %v661
        %v832 = vmul.f32 %v779, %v663
        %v833 = vmul.f32 %v784, %v665
        %v834 = vmul.f32 %v789, %v667
        %v835 = vmul.f32 %v794, %v669
        %v836 = vmul.f32 %v799, %v671
        %v837 = vmul.f32 %v804, %v673
        %v838 = vmul.f32 %v809, %v675
        %v839 = vmul.f32 %v814, %v677
        %v840 = vmul.f32 %v819, %v679
        %v841 = vmul.f32 %v824, %v681
        %v842 = vld [vmem:[%s5] sm:$0xff]
        %v843 = vld [vmem:[%s5 + $0x8] sm:$0xff]
        %v844 = vld [vmem:[%s5 + $0x10] sm:$0xff]
        %v845 = vld [vmem:[%s5 + $0x18] sm:$0xff]
        %v846 = vld [vmem:[%s5 + $0x20] sm:$0xff]
        %v847 = vld [vmem:[%s5 + $0x28] sm:$0xff]
        %v848 = vld [vmem:[%s5 + $0x30] sm:$0xff]
        %v849 = vld [vmem:[%s5 + $0x38] sm:$0xff]
        %v850 = vld [vmem:[%s5 + $0x40] sm:$0xff]
        %v851 = vld [vmem:[%s5 + $0x48] sm:$0xff]
        %v852 = vld [vmem:[%s5 + $0x50] sm:$0xff]
        %v853 = vld [vmem:[%s5 + $0x58] sm:$0xff]
        %v854 = vld [vmem:[%s5 + $0x60] sm:$0xff]
        %v855 = vld [vmem:[%s5 + $0x68] sm:$0xff]
        %v856 = vld [vmem:[%s5 + $0x70] sm:$0xff]
        %v857 = vld [vmem:[%s5 + $0x78] sm:$0xff]
        %v858 = vmul.f32 %v842, %v684
        %v859 = vmul.f32 %v843, %v687
        %v860 = vmul.f32 %v844, %v690
        %v861 = vmul.f32 %v845, %v693
        %v862 = vmul.f32 %v846, %v696
        %v863 = vmul.f32 %v847, %v699
        %v864 = vmul.f32 %v848, %v702
        %v865 = vmul.f32 %v849, %v705
        %v866 = vmul.f32 %v850, %v708
        %v867 = vmul.f32 %v851, %v711
        %v868 = vmul.f32 %v852, %v714
        %v869 = vmul.f32 %v853, %v717
        %v870 = vmul.f32 %v854, %v720
        %v871 = vmul.f32 %v855, %v723
        %v872 = vmul.f32 %v856, %v726
        %v873 = vmul.f32 %v857, %v729
        %v874 = vadd.f32 %v826, %v858
        %v875 = vadd.f32 %v827, %v859
        %v876 = vadd.f32 %v828, %v860
        %v877 = vadd.f32 %v829, %v861
        %v878 = vadd.f32 %v830, %v862
        %v879 = vadd.f32 %v831, %v863
        %v880 = vadd.f32 %v832, %v864
        %v881 = vadd.f32 %v833, %v865
        %v882 = vadd.f32 %v834, %v866
        %v883 = vadd.f32 %v835, %v867
        %v884 = vadd.f32 %v836, %v868
        %v885 = vadd.f32 %v837, %v869
        %v886 = vadd.f32 %v838, %v870
        %v887 = vadd.f32 %v839, %v871
        %v888 = vadd.f32 %v840, %v872
        %v889 = vadd.f32 %v841, %v873
        %v890 = vsel %vm585, %v874, 0.0
        %891 = vadd.xlane.f32.xlu0 %v890
        %v892 = vpop.xlane.xlu0 %891
        %v893 = vsel %vm585, %v875, 0.0
        %894 = vadd.xlane.f32.xlu0 %v893
        %v895 = vpop.xlane.xlu0 %894
        %v896 = vsel %vm585, %v876, 0.0
        %897 = vadd.xlane.f32.xlu0 %v896
        %v898 = vpop.xlane.xlu0 %897
        %v899 = vsel %vm585, %v877, 0.0
        %900 = vadd.xlane.f32.xlu0 %v899
        %v901 = vpop.xlane.xlu0 %900
        %v902 = vsel %vm585, %v878, 0.0
        %903 = vadd.xlane.f32.xlu0 %v902
        %v904 = vpop.xlane.xlu0 %903
        %v905 = vsel %vm585, %v879, 0.0
        %906 = vadd.xlane.f32.xlu0 %v905
        %v907 = vpop.xlane.xlu0 %906
        %v908 = vsel %vm585, %v880, 0.0
        %909 = vadd.xlane.f32.xlu0 %v908
        %v910 = vpop.xlane.xlu0 %909
        %v911 = vsel %vm585, %v881, 0.0
        %912 = vadd.xlane.f32.xlu0 %v911
        %v913 = vpop.xlane.xlu0 %912
        %v914 = vsel %vm585, %v882, 0.0
        %915 = vadd.xlane.f32.xlu0 %v914
        %v916 = vpop.xlane.xlu0 %915
        %v917 = vsel %vm585, %v883, 0.0
        %918 = vadd.xlane.f32.xlu0 %v917
        %v919 = vpop.xlane.xlu0 %918
        %v920 = vsel %vm585, %v884, 0.0
        %921 = vadd.xlane.f32.xlu0 %v920
        %v922 = vpop.xlane.xlu0 %921
        %v923 = vsel %vm585, %v885, 0.0
        %924 = vadd.xlane.f32.xlu0 %v923
        %v925 = vpop.xlane.xlu0 %924
        %v926 = vsel %vm585, %v886, 0.0
        %927 = vadd.xlane.f32.xlu0 %v926
        %v928 = vpop.xlane.xlu0 %927
        %v929 = vsel %vm585, %v887, 0.0
        %930 = vadd.xlane.f32.xlu0 %v929
        %v931 = vpop.xlane.xlu0 %930
        %v932 = vsel %vm585, %v888, 0.0
        %933 = vadd.xlane.f32.xlu0 %v932
        %v934 = vpop.xlane.xlu0 %933
        %v935 = vsel %vm585, %v889, 0.0
        %936 = vadd.xlane.f32.xlu0 %v935
        %v937 = vpop.xlane.xlu0 %936
        %v938 = vrcp.pop %v892
        %v939 = vrcp.pop %v895
        %v940 = vrcp.pop %v898
        %v941 = vrcp.pop %v901
        %v942 = vrcp.pop %v904
        %v943 = vrcp.pop %v907
        %v944 = vrcp.pop %v910
        %v945 = vrcp.pop %v913
        %v946 = vrcp.pop %v916
        %v947 = vrcp.pop %v919
        %v948 = vrcp.pop %v922
        %v949 = vrcp.pop %v925
        %v950 = vrcp.pop %v928
        %v951 = vrcp.pop %v931
        %v952 = vrcp.pop %v934
        %v953 = vrcp.pop %v937
        %v954 = vmul.f32 %v874, %v938
        %v955 = vmul.f32 %v875, %v939
        %v956 = vmul.f32 %v876, %v940
        %v957 = vmul.f32 %v877, %v941
        %v958 = vmul.f32 %v878, %v942
        %v959 = vmul.f32 %v879, %v943
        %v960 = vmul.f32 %v880, %v944
        %v961 = vmul.f32 %v881, %v945
        %v962 = vmul.f32 %v882, %v946
        %v963 = vmul.f32 %v883, %v947
        %v964 = vmul.f32 %v884, %v948
        %v965 = vmul.f32 %v885, %v949
        %v966 = vmul.f32 %v886, %v950
        %v967 = vmul.f32 %v887, %v951
        %v968 = vmul.f32 %v888, %v952
        %v969 = vmul.f32 %v889, %v953
        %v970 = vpack.c.bf16 %v955, %v954
        %v971 = vpack.c.bf16 %v957, %v956
        %v972 = vpack.c.bf16 %v959, %v958
        %v973 = vpack.c.bf16 %v961, %v960
        %v974 = vpack.c.bf16 %v963, %v962
        %v975 = vpack.c.bf16 %v965, %v964
        %v976 = vpack.c.bf16 %v967, %v966
        %v977 = vpack.c.bf16 %v969, %v968
        %978 = vrot.lane.b32.xlu0 %v457, 64
        %v979 = vpop.permute.xlu0 %978
        %v982 = vsel %vm585, %v970, 0
        %v985 = vsel %vm585, %v971, 0
        %v988 = vsel %vm585, %v972, 0
        %v991 = vsel %vm585, %v973, 0
        %v994 = vsel %vm585, %v974, 0
        %v997 = vsel %vm585, %v975, 0
        %v1000 = vsel %vm585, %v976, 0
        %v1003 = vsel %vm585, %v977, 0
        %1005 = vmatprep.subr.bf16.mxu0 0
        %1006 = vmatpush1.bf16.msra.mxu0 0
        %1007 = vmatprep.subr.bf16.mxu0 0
        %1008 = vmatpush1.bf16.msra.mxu0 0
        %1009 = vmatprep.subr.bf16.mxu0 0
        %1010 = vmatpush1.bf16.msra.mxu0 0
        %1011 = vmatprep.subr.bf16.mxu0 0
        %1012 = vmatpush1.bf16.msra.mxu0 0
        %1013 = vmatprep.subr.bf16.mxu0 0
        %1014 = vmatpush1.bf16.msra.mxu0 0
        %1015 = vmatprep.subr.bf16.mxu0 0
        %1016 = vmatpush1.bf16.msra.mxu0 0
        %1017 = vmatprep.subr.bf16.mxu0 0
        %1018 = vmatpush1.bf16.msra.mxu0 0
        %1019 = vmatprep.subr.bf16.mxu0 0
        %1020 = vmatpush1.bf16.msra.mxu0 %v979
        %1021 = vmatprep.subr.bf16.mxu0 0
        %1022 = vmatpush2.bf16.msra.mxu0 0
        %1023 = vmatprep.subr.bf16.mxu0 0
        %1024 = vmatpush2.bf16.msra.mxu0 0
        %1025 = vmatprep.subr.bf16.mxu0 0
        %1026 = vmatpush2.bf16.msra.mxu0 0
        %1027 = vmatprep.subr.bf16.mxu0 0
        %1028 = vmatpush2.bf16.msra.mxu0 0
        %1029 = vmatprep.subr.bf16.mxu0 0
        %1030 = vmatpush2.bf16.msra.mxu0 0
        %1031 = vmatprep.subr.bf16.mxu0 0
        %1032 = vmatpush2.bf16.msra.mxu0 0
        %1033 = vmatprep.subr.bf16.mxu0 0
        %1034 = vmatpush2.bf16.msra.mxu0 0
        %1035 = vmatprep.subr.bf16.mxu0 0
        %1036 = vmatpush2.bf16.msra.mxu0 0
        %1037 = vmatprep.mubr.bf16.mxu0 0
        %1038 = vmatmul.mubr.bf16.gmra.mxu0 %v982
        %v1039 = vpop.f32.mrf.mxu0
        %v1040 = vadd.f32 0.0, %v1039
        %v1041 = vpop.f32.mrf.mxu0
        %v1042 = vpop.f32.mrf.mxu0
        %v1043 = vadd.f32 0.0, %v1042
        %v1044 = vpop.f32.mrf.mxu0
        %1045 = vmatprep.mubr.bf16.mxu0 0
        %1046 = vmatmul.mubr.bf16.gmra.mxu0 %v985
        %v1047 = vpop.f32.mrf.mxu0
        %v1048 = vadd.f32 0.0, %v1047
        %v1049 = vpop.f32.mrf.mxu0
        %v1050 = vpop.f32.mrf.mxu0
        %v1051 = vadd.f32 0.0, %v1050
        %v1052 = vpop.f32.mrf.mxu0
        %1053 = vmatprep.mubr.bf16.mxu0 0
        %1054 = vmatmul.mubr.bf16.gmra.mxu0 %v988
        %v1055 = vpop.f32.mrf.mxu0
        %v1056 = vadd.f32 0.0, %v1055
        %v1057 = vpop.f32.mrf.mxu0
        %v1058 = vpop.f32.mrf.mxu0
        %v1059 = vadd.f32 0.0, %v1058
        %v1060 = vpop.f32.mrf.mxu0
        %1061 = vmatprep.mubr.bf16.mxu0 0
        %1062 = vmatmul.mubr.bf16.gmra.mxu0 %v991
        %v1063 = vpop.f32.mrf.mxu0
        %v1064 = vadd.f32 0.0, %v1063
        %v1065 = vpop.f32.mrf.mxu0
        %v1066 = vpop.f32.mrf.mxu0
        %v1067 = vadd.f32 0.0, %v1066
        %v1068 = vpop.f32.mrf.mxu0
        %1069 = vmatprep.mubr.bf16.mxu0 0
        %1070 = vmatmul.mubr.bf16.gmra.mxu0 %v994
        %v1071 = vpop.f32.mrf.mxu0
        %v1072 = vadd.f32 0.0, %v1071
        %v1073 = vpop.f32.mrf.mxu0
        %v1074 = vpop.f32.mrf.mxu0
        %v1075 = vadd.f32 0.0, %v1074
        %v1076 = vpop.f32.mrf.mxu0
        %1077 = vmatprep.mubr.bf16.mxu0 0
        %1078 = vmatmul.mubr.bf16.gmra.mxu0 %v997
        %v1079 = vpop.f32.mrf.mxu0
        %v1080 = vadd.f32 0.0, %v1079
        %v1081 = vpop.f32.mrf.mxu0
        %v1082 = vpop.f32.mrf.mxu0
        %v1083 = vadd.f32 0.0, %v1082
        %v1084 = vpop.f32.mrf.mxu0
        %1085 = vmatprep.mubr.bf16.mxu0 0
        %1086 = vmatmul.mubr.bf16.gmra.mxu0 %v1000
        %v1087 = vpop.f32.mrf.mxu0
        %v1088 = vadd.f32 0.0, %v1087
        %v1089 = vpop.f32.mrf.mxu0
        %v1090 = vpop.f32.mrf.mxu0
        %v1091 = vadd.f32 0.0, %v1090
        %v1092 = vpop.f32.mrf.mxu0
        %1093 = vmatprep.mubr.bf16.mxu0 0
        %1094 = vmatmul.mubr.bf16.gmra.mxu0 %v1003
        %v1095 = vpop.f32.mrf.mxu0
        %v1096 = vadd.f32 0.0, %v1095
        %v1097 = vpop.f32.mrf.mxu0
        %v1098 = vpop.f32.mrf.mxu0
        %v1099 = vadd.f32 0.0, %v1098
        %v1100 = vpop.f32.mrf.mxu0
        %1101 = vdwg.mxu0
        %v1102 = vmul.f32 %v1040, %v396
        %v1103 = vmul.f32 %v1043, %v396
        %v1104 = vmul.f32 %v1048, %v400
        %v1105 = vmul.f32 %v1051, %v400
        %v1106 = vmul.f32 %v1056, %v404
        %v1107 = vmul.f32 %v1059, %v404
        %v1108 = vmul.f32 %v1064, %v408
        %v1109 = vmul.f32 %v1067, %v408
        %v1110 = vmul.f32 %v1072, %v412
        %v1111 = vmul.f32 %v1075, %v412
        %v1112 = vmul.f32 %v1080, %v416
        %v1113 = vmul.f32 %v1083, %v416
        %v1114 = vmul.f32 %v1088, %v420
        %v1115 = vmul.f32 %v1091, %v420
        %v1116 = vmul.f32 %v1096, %v424
        %v1117 = vmul.f32 %v1099, %v424
        %v1118 = vsel %vm297, %v1102, 0.0
        %v1119 = vsel %vm297, %v1104, 0.0
        %v1120 = vadd.f32 %v1118, %v1119
        %v1121 = vsel %vm297, %v1106, 0.0
        %v1122 = vadd.f32 %v1120, %v1121
        %v1123 = vsel %vm297, %v1108, 0.0
        %v1124 = vadd.f32 %v1122, %v1123
        %v1125 = vsel %vm297, %v1110, 0.0
        %v1126 = vadd.f32 %v1124, %v1125
        %v1127 = vsel %vm297, %v1112, 0.0
        %v1128 = vadd.f32 %v1126, %v1127
        %v1129 = vsel %vm297, %v1114, 0.0
        %v1130 = vadd.f32 %v1128, %v1129
        %v1131 = vsel %vm297, %v1116, 0.0
        %v1132 = vadd.f32 %v1130, %v1131
        %v1133 = vsel %vm297, %v1103, 0.0
        %v1134 = vsel %vm297, %v1105, 0.0
        %v1135 = vadd.f32 %v1133, %v1134
        %v1136 = vsel %vm297, %v1107, 0.0
        %v1137 = vadd.f32 %v1135, %v1136
        %v1138 = vsel %vm297, %v1109, 0.0
        %v1139 = vadd.f32 %v1137, %v1138
        %v1140 = vsel %vm297, %v1111, 0.0
        %v1141 = vadd.f32 %v1139, %v1140
        %v1142 = vsel %vm297, %v1113, 0.0
        %v1143 = vadd.f32 %v1141, %v1142
        %v1144 = vsel %vm297, %v1115, 0.0
        %v1145 = vadd.f32 %v1143, %v1144
        %v1146 = vsel %vm297, %v1117, 0.0
        %v1147 = vadd.f32 %v1145, %v1146
        %v1148 = vpack.c.bf16 %v1147, %v1132
        %v1149 = vld [vmem:[%s2] sm:$0xf]
        %v1150 = vld [vmem:[%s2 + $0x4] sm:$0xf]
        %v1151 = vld [vmem:[%s2 + $0x8] sm:$0xf]
        %v1152 = vld [vmem:[%s2 + $0xc] sm:$0xf]
        %v1153 = vld [vmem:[%s3] sm:$0x1]
        %v1155 = vlaneseq
        %v1156 = vshrl.u32 %v1155, 7
        %v1157 = vsub.s32 0, %v1156
        %v1158 = vrot.slane %v1153, %v1157
        %v1164 = vunpack.c.l.b16 %v1149
        %v1165 = vunpack.c.l.b16 %v1150
        %v1166 = vunpack.c.l.b16 %v1151
        %v1167 = vunpack.c.l.b16 %v1152
        %v1168 = vpack.c.b16 %v1165, %v1164
        %v1169 = vpack.c.b16 %v1167, %v1166
        %v1173 = vsel %vm297, %v1148, 0
        %1175 = vmatprep.subr.bf16.mxu0 0
        %1176 = vmatpush1.bf16.msra.mxu0 0
        %1177 = vmatprep.subr.bf16.mxu0 0
        %1178 = vmatpush1.bf16.msra.mxu0 0
        %1179 = vmatprep.subr.bf16.mxu0 0
        %1180 = vmatpush1.bf16.msra.mxu0 0
        %1181 = vmatprep.subr.bf16.mxu0 0
        %1182 = vmatpush1.bf16.msra.mxu0 0
        %1183 = vmatprep.subr.bf16.mxu0 0
        %1184 = vmatpush1.bf16.msra.mxu0 0
        %1185 = vmatprep.subr.bf16.mxu0 0
        %1186 = vmatpush1.bf16.msra.mxu0 0
        %1187 = vmatprep.subr.bf16.mxu0 0
        %1188 = vmatpush1.bf16.msra.mxu0 %v1169
        %1189 = vmatprep.subr.bf16.mxu0 0
        %1190 = vmatpush1.bf16.msra.mxu0 %v1168
        %1191 = vmatprep.subr.bf16.mxu0 0
        %1192 = vmatpush2.bf16.msra.mxu0 0
        %1193 = vmatprep.subr.bf16.mxu0 0
        %1194 = vmatpush2.bf16.msra.mxu0 0
        %1195 = vmatprep.subr.bf16.mxu0 0
        %1196 = vmatpush2.bf16.msra.mxu0 0
        %1197 = vmatprep.subr.bf16.mxu0 0
        %1198 = vmatpush2.bf16.msra.mxu0 0
        %1199 = vmatprep.subr.bf16.mxu0 0
        %1200 = vmatpush2.bf16.msra.mxu0 0
        %1201 = vmatprep.subr.bf16.mxu0 0
        %1202 = vmatpush2.bf16.msra.mxu0 0
        %1203 = vmatprep.subr.bf16.mxu0 0
        %1204 = vmatpush2.bf16.msra.mxu0 0
        %1205 = vmatprep.subr.bf16.mxu0 0
        %1206 = vmatpush2.bf16.msra.mxu0 0
        %1207 = vmatprep.mubr.bf16.mxu0 0
        %1208 = vmatmul.mubr.bf16.gmra.mxu0 %v1173
        %v1209 = vpop.f32.mrf.mxu0
        %v1210 = vadd.f32 %v1158, %v1209
        %v1211 = vpop.f32.mrf.mxu0
        %v1212 = vpop.f32.mrf.mxu0
        %v1213 = vadd.f32 %v1158, %v1212
        %v1214 = vpop.f32.mrf.mxu0
        %1215 = vdwg.mxu0
        %1216 = vst.msk [vmem:[%s271] sm:$0xff] %vm297, %v1210
        %1217 = vst.msk [vmem:[%s271 + $0x8] sm:$0xff] %vm297, %v1213
        %s1218 = sand.u32 %s181, 1
        %s1219 = scalar_lea.sflag [#allocation3], %s1218
        %s1220 = sand.u32 %s181, 1
        %s1221 = smul.addr %s1220, 16
        %s1222 = scalar_lea.vmem [#allocation2], %s1221
        // Predicated region
        $region49: #{tpu_custom_call.1} parent=47 // pred_check
          %p1223 = pneg %p191
        $region50: #{tpu_custom_call.1} parent=47 // pred_check_branch
          %1225 = sbr.rel (%p1223) target = $region52
        $region51: #{tpu_custom_call.1} parent=47 // pred_region
          %s1227 = ssub.s32 256, 256
          %1228 = vsyncadd %s1219, %s1227
          %s1229 = smul.addr %s21, 2
          %s1230 = smul.addr %s1229, 128
          %s1231 = scalar_lea.hbm %s7, %s1230
          %s1232 = sshll.u32 %s1222, 4
          %s1233 = int_to_ptr.vmem [resolvable:$true] %s1232
          %1238 = dma.vmem_to_hbm [thread:$0]  %s1233, 256, %s1231, %s1219, 128, 128, 8
        $region52: #{tpu_custom_call.1} parent=47 // pred_fallthru
          _
      $region48: #{tpu_custom_call.1} parent=5 // pred_fallthru
        _
      %p1239 = scmp.le.s32.totalorder 2, %s16
      // Predicated region
      $region53: #{tpu_custom_call.1} parent=5 // pred_check
        %p1240 = pneg %p1239
      $region54: #{tpu_custom_call.1} parent=5 // pred_check_branch
        %1242 = sbr.rel (%p1240) target = $region56
      $region55: #{tpu_custom_call.1} parent=5 // pred_region
        %s1243 = ssub.s32 %s16, 2
        // Predicated region
        $region57: #{tpu_custom_call.1} parent=55 // pred_check
          %p1244 = pneg %p197
        $region58: #{tpu_custom_call.1} parent=55 // pred_check_branch
          %1246 = sbr.rel (%p1244) target = $region60
        $region59: #{tpu_custom_call.1} parent=55 // pred_region
          %s1247 = sand.u32 %s182, 1
          %s1248 = scalar_lea.sflag [#allocation3], %s1247
          %s1249 = sand.u32 %s182, 1
          %s1250 = smul.addr %s1249, 16
          %s1251 = scalar_lea.vmem [#allocation2], %s1250
          %1252 = dma.done %s1248, 256
        $region60: #{tpu_custom_call.1} parent=55 // pred_fallthru
          _
      $region56: #{tpu_custom_call.1} parent=5 // pred_fallthru
        _
    $region6: #{tpu_custom_call.1} parent=1 // loop_footer
      %s20 = sadd.s32 1, %s16
    $region7: #{tpu_custom_call.1} parent=1 // loop_footer_branch
      %15 = sbr.rel target = $region3
    $region8: #{tpu_custom_call.1} parent=1 // loop_exit
      _
    %1253 = vsyncpa [#allocation3], 1
    %s1254 = scalar_lea.sflag [#allocation3], 1
    %1255 = vsyncpa %s1254, 1

</llo_original>
